<compile_context>
chip_gen: v7x
topology: tpu7x:2x2x1
jax: 0.10.0
libtpu: 0.0.40
codegen_flags: <defaults>
</compile_context>

<pallas_src>
import functools

import jax
import jax.numpy as jnp
from jax.experimental import pallas as pl
from jax.experimental.pallas import tpu as pltpu

LANE = 128


def _round_up(x, m):
    return ((x + m - 1) // m) * m


@functools.lru_cache(maxsize=1)
def _tpu_hw_info():
    """Best-effort hardware query; conservative fallbacks if anything fails."""
    vmem_cap = 64 << 20   # conservative default = v7x per-core VMEM
    num_tc = 2            # conservative default: assume megacore-style sharding
    try:
        vmem_cap = int(pltpu.get_tpu_info().vmem_capacity_bytes)
    except Exception:
        pass
    try:
        kind = jax.devices()[0].device_kind.lower()
        # v5e / v6e: 1 TensorCore per chip; v4 / v7x: 2 TensorCores per chip.
        num_tc = 2 if ("v7" in kind or "7x" in kind or "v4" in kind) else 1
    except Exception:
        pass
    return vmem_cap, num_tc


def _pick_batch_tile(batch, in_dim, hid_p, out_dim, out_itemsize, vmem_cap, num_tc):
    """Batch rows per grid step.

    - Small batches: one full-array block (no grid/pipeline overhead).
    - Otherwise: at least 2 grid steps per TensorCore (so DMA actually pipelines
      within a core), capped by a VMEM budget and a per-generation hard cap.
    """
    if batch <= 64:
        return batch
    min_steps = 2 * max(1, num_tc)
    bt_steps = _round_up(pl.cdiv(batch, min_steps), 8)
    # Per-row VMEM: double-buffered x/out tiles + f32/bf16 live intermediates.
    per_row = 2 * in_dim * 4 + 2 * out_dim * out_itemsize + 3 * hid_p * 4
    # Weights/biases held resident (single-buffered target).
    fixed = (in_dim * hid_p + hid_p * hid_p + hid_p * out_dim) * 2 \
        + (2 * hid_p + out_dim) * 4
    budget = int(0.5 * vmem_cap) - fixed
    bt_vmem = max(8, (max(budget, 0) // max(per_row, 1)) // 8 * 8)
    hard_cap = 1024 if vmem_cap >= (96 << 20) else 384   # v5e/v6e vs v7x-class
    return max(8, min(bt_steps, bt_vmem, hard_cap))


def _vmem_limit_bytes(bt, in_dim, hid_p, out_dim, out_itemsize, vmem_cap,
                      single_buffer_weights):
    wbuf = 1 if single_buffer_weights else 2
    x_bytes = 2 * bt * in_dim * 4
    o_bytes = 2 * bt * out_dim * out_itemsize
    w_bytes = wbuf * (in_dim * hid_p + hid_p * hid_p + hid_p * out_dim) * 2
    b_bytes = wbuf * (2 * hid_p + out_dim) * 4
    act_bytes = 3 * bt * hid_p * 4          # h1/h2 in f32 + bf16 copies (generous)
    est = x_bytes + o_bytes + w_bytes + b_bytes + act_bytes
    limit = int(est * 1.5) + (4 << 20)      # headroom for compiler scratch
    return int(min(vmem_cap, max(limit, 16 << 20)))


def _mlp_kernel(x_ref, w1_ref, b1_ref, w2_ref, b2_ref, w3_ref, b3_ref, out_ref):
    # Whole 3-layer MLP for one batch tile, entirely in VMEM.
    # Matmuls run bf16 x bf16 on the MXU with f32 accumulation; bias/ReLU in f32.
    x = x_ref[...].astype(jnp.bfloat16)     # no-op if producer already gave bf16
    h1 = jnp.dot(x, w1_ref[...], preferred_element_type=jnp.float32) + b1_ref[...]
    h1 = jnp.maximum(h1, 0.0).astype(jnp.bfloat16)
    h2 = jnp.dot(h1, w2_ref[...], preferred_element_type=jnp.float32) + b2_ref[...]
    h2 = jnp.maximum(h2, 0.0).astype(jnp.bfloat16)
    out = jnp.dot(h2, w3_ref[...], preferred_element_type=jnp.float32) + b3_ref[...]
    out_ref[...] = out.astype(out_ref.dtype)


@functools.partial(
    jax.jit,
    static_argnames=("seq_len", "output_size", "out_dtype", "single_buffer_weights"),
)
def _forward_impl(x, packed_params, *, seq_len, output_size, out_dtype,
                  single_buffer_weights):
    w1, b1, w2, b2, w3, b3 = packed_params
    B, in_dim = x.shape
    hid_p = w1.shape[1]                     # hidden padded to a multiple of 128
    out_dim = w3.shape[1]                   # exact seq_len * output_size (no padding)
    assert out_dim == seq_len * output_size, (out_dim, seq_len, output_size)

    vmem_cap, num_tc = _tpu_hw_info()
    out_itemsize = jnp.dtype(out_dtype).itemsize
    x_itemsize = jnp.dtype(x.dtype).itemsize

    bt = _pick_batch_tile(B, in_dim, hid_p, out_dim, out_itemsize, vmem_cap, num_tc)
    grid = (pl.cdiv(B, bt),)
    vmem_limit = _vmem_limit_bytes(bt, in_dim, hid_p, out_dim, out_itemsize,
                                   vmem_cap, single_buffer_weights)

    # Megacore heuristic: only shard the batch axis across TensorCores when the
    # x/out streaming traffic dominates the weight traffic; otherwise each core
    # would pull its own copy of W1/W2/W3 from HBM (~2x the dominant term).
    weight_hbm_bytes = (in_dim * hid_p + hid_p * hid_p + hid_p * out_dim) * 2
    stream_hbm_bytes = B * (in_dim * x_itemsize + out_dim * out_itemsize)
    semantics = "parallel"
    if num_tc > 1 and weight_hbm_bytes > stream_hbm_bytes:
        semantics = "arbitrary"

    if single_buffer_weights:
        # Grid-invariant operands -> single VMEM buffer (halves weight VMEM).
        def wt_spec(shape):
            return pl.BlockSpec(shape, lambda i: (0, 0), pipeline_mode=pl.Buffered(1))
    else:
        def wt_spec(shape):
            return pl.BlockSpec(shape, lambda i: (0, 0))

    flat = pl.pallas_call(
        _mlp_kernel,
        out_shape=jax.ShapeDtypeStruct((B, out_dim), out_dtype),
        grid_spec=pltpu.PrefetchScalarGridSpec(
            num_scalar_prefetch=0,
            grid=grid,
            in_specs=[
                pl.BlockSpec((bt, in_dim), lambda i: (i, 0)),  # x tile (streamed)
                wt_spec((in_dim, hid_p)),    # W1 (in, hid_p)   bf16
                wt_spec((1, hid_p)),         # b1               f32
                wt_spec((hid_p, hid_p)),     # W2               bf16
                wt_spec((1, hid_p)),         # b2               f32
                wt_spec((hid_p, out_dim)),   # W3 (hid_p, out)  bf16
                wt_spec((1, out_dim)),       # b3               f32
            ],
            out_specs=pl.BlockSpec((bt, out_dim), lambda i: (i, 0)),
        ),
        compiler_params=pltpu.CompilerParams(
            dimension_semantics=(semantics,),
            vmem_limit_bytes=vmem_limit,
        ),
    )(x, w1, b1, w2, b2, w3, b3)

    # Pure-view reshape; no trim pass (the kernel already wrote exact out_dim lanes).
    return flat.reshape(B, seq_len, output_size)


# Feature probe for pipeline_mode=pl.Buffered(1) on weight specs; falls back to
# default double-buffering (previous, known-good configuration) if unsupported.
_SINGLE_BUFFER_WEIGHTS_OK = None


def track_transfer_forward(x, packed_params, *, seq_len, output_size,
                           out_dtype=jnp.float32):
    """x: (B, input_size) f32 (or bf16) -> (B, seq_len, output_size) `out_dtype`."""
    global _SINGLE_BUFFER_WEIGHTS_OK
    kwargs = dict(seq_len=seq_len, output_size=output_size, out_dtype=out_dtype)
    if _SINGLE_BUFFER_WEIGHTS_OK is None:
        try:
            out = _forward_impl(x, packed_params, single_buffer_weights=True, **kwargs)
            _SINGLE_BUFFER_WEIGHTS_OK = True
            return out
        except Exception:
            _SINGLE_BUFFER_WEIGHTS_OK = False
    if _SINGLE_BUFFER_WEIGHTS_OK:
        return _forward_impl(x, packed_params, single_buffer_weights=True, **kwargs)
    return _forward_impl(x, packed_params, single_buffer_weights=False, **kwargs)


def init_params(key, input_size, hidden_size, seq_len, output_size):
    """Kaiming-normal weights (fan_in, gain=sqrt(2)), zero biases.

    Stored transposed vs. PyTorch nn.Linear: (in_features, out_features), so
    y = x @ W + b  ==  x @ W_pt.T + b_pt  (matching the module's initialization).
    """
    out_dim = seq_len * output_size
    k1, k2, k3 = jax.random.split(key, 3)

    def kaiming(k, fan_in, fan_out):
        std = (2.0 / fan_in) ** 0.5
        return jax.random.normal(k, (fan_in, fan_out), dtype=jnp.float32) * std

    w1 = kaiming(k1, input_size, hidden_size)
    b1 = jnp.zeros((1, hidden_size), jnp.float32)
    w2 = kaiming(k2, hidden_size, hidden_size)
    b2 = jnp.zeros((1, hidden_size), jnp.float32)
    w3 = kaiming(k3, hidden_size, out_dim)
    b3 = jnp.zeros((1, out_dim), jnp.float32)
    return (w1, b1, w2, b2, w3, b3)


def pack_params(params, lane=LANE):
    """One-off packing for the kernel:
       - hidden dim zero-padded to a multiple of 128 (lane-dense intermediates),
       - weights cast to bf16 (MXU-native), biases stay f32,
       - output dim kept EXACT (no padding) so the kernel writes the final layout
         directly and no wrapper-side trim pass over the output is needed.
    Zero padding is required for correctness: padded hidden columns produce zero
    pre-activations, ReLU(0)==0, and the matching padded rows of W2/W3 are zero,
    so padding never leaks into real outputs (revisit for a non-ReLU activation)."""
    w1, b1, w2, b2, w3, b3 = params
    hid = w1.shape[1]
    hid_p = _round_up(hid, lane)
    pad_h = hid_p - hid

    w1p = jnp.pad(w1, ((0, 0), (0, pad_h))).astype(jnp.bfloat16)
    b1p = jnp.pad(b1, ((0, 0), (0, pad_h)))
    w2p = jnp.pad(w2, ((0, pad_h), (0, pad_h))).astype(jnp.bfloat16)
    b2p = jnp.pad(b2, ((0, 0), (0, pad_h)))
    w3p = jnp.pad(w3, ((0, pad_h), (0, 0))).astype(jnp.bfloat16)
    b3p = b3
    return (w1p, b1p, w2p, b2p, w3p, b3p)


def _reference_bf16(x, packed_params):
    """Pure-JAX reference mirroring the kernel numerics (bf16 MXU inputs, f32 acc)."""
    w1, b1, w2, b2, w3, b3 = packed_params
    xb = x.astype(jnp.bfloat16)
    h1 = jnp.maximum(jnp.dot(xb, w1, preferred_element_type=jnp.float32) + b1, 0.0)
    h1 = h1.astype(jnp.bfloat16)
    h2 = jnp.maximum(jnp.dot(h1, w2, preferred_element_type=jnp.float32) + b2, 0.0)
    h2 = h2.astype(jnp.bfloat16)
    return jnp.dot(h2, w3, preferred_element_type=jnp.float32) + b3


def _reference_f32(x, params):
    w1, b1, w2, b2, w3, b3 = params
    h1 = jnp.maximum(x @ w1 + b1, 0.0)
    h2 = jnp.maximum(h1 @ w2 + b2, 0.0)
    return h2 @ w3 + b3


if __name__ == "__main__":
    key = jax.random.PRNGKey(0)

    # --- Case 1: small toy shapes (single-block grid) ------------------------
    input_size, hidden_size, seq_len, output_size, batch = 32, 32, 8, 9, 16
    kx, kp, key = jax.random.split(key, 3)
    x = jax.random.normal(kx, (batch, input_size), dtype=jnp.float32)
    params = init_params(kp, input_size, hidden_size, seq_len, output_size)
    packed = pack_params(params)

    out = track_transfer_forward(x, packed, seq_len=seq_len, output_size=output_size)
    out = jax.block_until_ready(out)
    assert out.shape == (batch, seq_len, output_size), out.shape

    ref = _reference_bf16(x, packed).reshape(batch, seq_len, output_size)
    assert jnp.allclose(out, ref, atol=2e-3, rtol=2e-3), \
        "mismatch vs. bf16-mirrored reference (small)"
    ref32 = _reference_f32(x, params).reshape(batch, seq_len, output_size)
    assert jnp.allclose(out, ref32, atol=0.1, rtol=0.1), \
        "mismatch vs. f32 reference (small)"

    # --- Case 2: module-default shapes, multi-step grid + ragged last block --
    input_size, hidden_size, seq_len, output_size, batch = 256, 256, 10, 9, 200
    kx2, kp2 = jax.random.split(key)
    x2 = jax.random.normal(kx2, (batch, input_size), dtype=jnp.float32)
    params2 = init_params(kp2, input_size, hidden_size, seq_len, output_size)
    packed2 = pack_params(params2)

    out2 = track_transfer_forward(x2, packed2, seq_len=seq_len, output_size=output_size)
    out2 = jax.block_until_ready(out2)
    assert out2.shape == (batch, seq_len, output_size), out2.shape

    ref2 = _reference_bf16(x2, packed2).reshape(batch, seq_len, output_size)
    assert jnp.allclose(out2, ref2, atol=5e-3, rtol=5e-3), \
        "mismatch vs. bf16-mirrored reference (default cfg)"

    print("KERNEL_OK")
</pallas_src>

<mosaic_0001>
module attributes {stable_mosaic.version = 11 : i64} {
  func.func @_mlp_kernel(%arg0: i32, %arg1: memref<16x32xf32, #tpu.memory_space<vmem>>, %arg2: memref<32x128xbf16, #tpu.memory_space<vmem>>, %arg3: memref<1x128xf32, #tpu.memory_space<vmem>>, %arg4: memref<128x128xbf16, #tpu.memory_space<vmem>>, %arg5: memref<1x128xf32, #tpu.memory_space<vmem>>, %arg6: memref<128x72xbf16, #tpu.memory_space<vmem>>, %arg7: memref<1x72xf32, #tpu.memory_space<vmem>>, %arg8: memref<16x72xf32, #tpu.memory_space<vmem>>) attributes {dimension_semantics = [#tpu.dimension_semantics<parallel>], iteration_bounds = array<i64: 1>, scalar_prefetch = 0 : i64, scratch_operands = 0 : i64, tpu.core_type = #tpu.core_type<tc>, window_params = [{transform_indices = @transform_0, window_bounds = array<i64: 16, 32>}, {pipeline_mode = #tpu.pipeline_mode<synchronous>, transform_indices = @transform_1, window_bounds = array<i64: 32, 128>}, {pipeline_mode = #tpu.pipeline_mode<synchronous>, transform_indices = @transform_2, window_bounds = array<i64: 1, 128>}, {pipeline_mode = #tpu.pipeline_mode<synchronous>, transform_indices = @transform_3, window_bounds = array<i64: 128, 128>}, {pipeline_mode = #tpu.pipeline_mode<synchronous>, transform_indices = @transform_4, window_bounds = array<i64: 1, 128>}, {pipeline_mode = #tpu.pipeline_mode<synchronous>, transform_indices = @transform_5, window_bounds = array<i64: 128, 72>}, {pipeline_mode = #tpu.pipeline_mode<synchronous>, transform_indices = @transform_6, window_bounds = array<i64: 1, 72>}, {transform_indices = @transform_7, window_bounds = array<i64: 16, 72>}]} {
    %c0 = arith.constant 0 : index
    %c0_0 = arith.constant 0 : index
    %0 = vector.load %arg1[%c0, %c0_0] : memref<16x32xf32, #tpu.memory_space<vmem>>, vector<16x32xf32>
    %1 = arith.truncf %0 : vector<16x32xf32> to vector<16x32xbf16>
    %c0_1 = arith.constant 0 : index
    %c0_2 = arith.constant 0 : index
    %2 = vector.load %arg2[%c0_1, %c0_2] : memref<32x128xbf16, #tpu.memory_space<vmem>>, vector<32x128xbf16>
    %cst = arith.constant dense<0.000000e+00> : vector<16x128xf32>
    %3 = tpu.matmul %1, %2, %cst {dimension_numbers = #tpu.dot_dimension_numbers<[1], [0], [0], [1], [0, 0, 1, 1], [], []>} : vector<16x32xbf16>, vector<32x128xbf16>, vector<16x128xf32> -> vector<16x128xf32>
    %c0_3 = arith.constant 0 : index
    %c0_4 = arith.constant 0 : index
    %4 = vector.load %arg3[%c0_3, %c0_4] : memref<1x128xf32, #tpu.memory_space<vmem>>, vector<1x128xf32>
    %5 = vector.broadcast %4 : vector<1x128xf32> to vector<16x128xf32>
    %6 = arith.addf %3, %5 : vector<16x128xf32>
    %cst_5 = arith.constant 0.000000e+00 : f32
    %7 = vector.broadcast %cst_5 : f32 to vector<16x128xf32>
    %8 = arith.maximumf %6, %7 : vector<16x128xf32>
    %9 = arith.truncf %8 : vector<16x128xf32> to vector<16x128xbf16>
    %c0_6 = arith.constant 0 : index
    %c0_7 = arith.constant 0 : index
    %10 = vector.load %arg4[%c0_6, %c0_7] : memref<128x128xbf16, #tpu.memory_space<vmem>>, vector<128x128xbf16>
    %cst_8 = arith.constant dense<0.000000e+00> : vector<16x128xf32>
    %11 = tpu.matmul %9, %10, %cst_8 {dimension_numbers = #tpu.dot_dimension_numbers<[1], [0], [0], [1], [0, 0, 1, 1], [], []>} : vector<16x128xbf16>, vector<128x128xbf16>, vector<16x128xf32> -> vector<16x128xf32>
    %c0_9 = arith.constant 0 : index
    %c0_10 = arith.constant 0 : index
    %12 = vector.load %arg5[%c0_9, %c0_10] : memref<1x128xf32, #tpu.memory_space<vmem>>, vector<1x128xf32>
    %13 = vector.broadcast %12 : vector<1x128xf32> to vector<16x128xf32>
    %14 = arith.addf %11, %13 : vector<16x128xf32>
    %cst_11 = arith.constant 0.000000e+00 : f32
    %15 = vector.broadcast %cst_11 : f32 to vector<16x128xf32>
    %16 = arith.maximumf %14, %15 : vector<16x128xf32>
    %17 = arith.truncf %16 : vector<16x128xf32> to vector<16x128xbf16>
    %c0_12 = arith.constant 0 : index
    %c0_13 = arith.constant 0 : index
    %18 = vector.load %arg6[%c0_12, %c0_13] : memref<128x72xbf16, #tpu.memory_space<vmem>>, vector<128x72xbf16>
    %cst_14 = arith.constant dense<0.000000e+00> : vector<16x72xf32>
    %19 = tpu.matmul %17, %18, %cst_14 {dimension_numbers = #tpu.dot_dimension_numbers<[1], [0], [0], [1], [0, 0, 1, 1], [], []>} : vector<16x128xbf16>, vector<128x72xbf16>, vector<16x72xf32> -> vector<16x72xf32>
    %c0_15 = arith.constant 0 : index
    %c0_16 = arith.constant 0 : index
    %20 = vector.load %arg7[%c0_15, %c0_16] : memref<1x72xf32, #tpu.memory_space<vmem>>, vector<1x72xf32>
    %21 = vector.broadcast %20 : vector<1x72xf32> to vector<16x72xf32>
    %22 = arith.addf %19, %21 : vector<16x72xf32>
    %c0_17 = arith.constant 0 : index
    %c0_18 = arith.constant 0 : index
    %23 = vector.load %arg8[%c0_17, %c0_18] : memref<16x72xf32, #tpu.memory_space<vmem>>, vector<16x72xf32>
    tpu.vector_store %arg8[%c0_17, %c0_18], %22 {strides = array<i32>} : memref<16x72xf32, #tpu.memory_space<vmem>>, vector<16x72xf32>,
    return
  }
  func.func @transform_0(%arg0: i32) -> (i32, i32) {
    %c0_i32 = arith.constant 0 : i32
    %c0_i32_0 = arith.constant 0 : i32
    return %arg0, %c0_i32 : i32, i32
  }
  func.func @transform_1(%arg0: i32) -> (i32, i32) {
    %c0_i32 = arith.constant 0 : i32
    %c0_i32_0 = arith.constant 0 : i32
    %c0_i32_1 = arith.constant 0 : i32
    return %c0_i32, %c0_i32_0 : i32, i32
  }
  func.func @transform_2(%arg0: i32) -> (i32, i32) {
    %c0_i32 = arith.constant 0 : i32
    %c0_i32_0 = arith.constant 0 : i32
    %c0_i32_1 = arith.constant 0 : i32
    return %c0_i32, %c0_i32_0 : i32, i32
  }
  func.func @transform_3(%arg0: i32) -> (i32, i32) {
    %c0_i32 = arith.constant 0 : i32
    %c0_i32_0 = arith.constant 0 : i32
    %c0_i32_1 = arith.constant 0 : i32
    return %c0_i32, %c0_i32_0 : i32, i32
  }
  func.func @transform_4(%arg0: i32) -> (i32, i32) {
    %c0_i32 = arith.constant 0 : i32
    %c0_i32_0 = arith.constant 0 : i32
    %c0_i32_1 = arith.constant 0 : i32
    return %c0_i32, %c0_i32_0 : i32, i32
  }
  func.func @transform_5(%arg0: i32) -> (i32, i32) {
    %c0_i32 = arith.constant 0 : i32
    %c0_i32_0 = arith.constant 0 : i32
    %c0_i32_1 = arith.constant 0 : i32
    return %c0_i32, %c0_i32_0 : i32, i32
  }
  func.func @transform_6(%arg0: i32) -> (i32, i32) {
    %c0_i32 = arith.constant 0 : i32
    %c0_i32_0 = arith.constant 0 : i32
    %c0_i32_1 = arith.constant 0 : i32
    return %c0_i32, %c0_i32_0 : i32, i32
  }
  func.func @transform_7(%arg0: i32) -> (i32, i32) {
    %c0_i32 = arith.constant 0 : i32
    %c0_i32_0 = arith.constant 0 : i32
    return %arg0, %c0_i32 : i32, i32
  }
}

module attributes {stable_mosaic.version = 11 : i64} {
  func.func @_mlp_kernel(%arg0: i32, %arg1: memref<16x32xf32, #tpu.memory_space<vmem>>, %arg2: memref<32x128xbf16, #tpu.memory_space<vmem>>, %arg3: memref<1x128xf32, #tpu.memory_space<vmem>>, %arg4: memref<128x128xbf16, #tpu.memory_space<vmem>>, %arg5: memref<1x128xf32, #tpu.memory_space<vmem>>, %arg6: memref<128x72xbf16, #tpu.memory_space<vmem>>, %arg7: memref<1x72xf32, #tpu.memory_space<vmem>>, %arg8: memref<16x72xf32, #tpu.memory_space<vmem>>) attributes {dimension_semantics = [#tpu.dimension_semantics<parallel>], iteration_bounds = array<i64: 1>, scalar_prefetch = 0 : i64, scratch_operands = 0 : i64, tpu.core_type = #tpu.core_type<tc>, window_params = [{transform_indices = @transform_0, window_bounds = array<i64: 16, 32>}, {pipeline_mode = #tpu.pipeline_mode<synchronous>, transform_indices = @transform_1, window_bounds = array<i64: 32, 128>}, {pipeline_mode = #tpu.pipeline_mode<synchronous>, transform_indices = @transform_2, window_bounds = array<i64: 1, 128>}, {pipeline_mode = #tpu.pipeline_mode<synchronous>, transform_indices = @transform_3, window_bounds = array<i64: 128, 128>}, {pipeline_mode = #tpu.pipeline_mode<synchronous>, transform_indices = @transform_4, window_bounds = array<i64: 1, 128>}, {pipeline_mode = #tpu.pipeline_mode<synchronous>, transform_indices = @transform_5, window_bounds = array<i64: 128, 72>}, {pipeline_mode = #tpu.pipeline_mode<synchronous>, transform_indices = @transform_6, window_bounds = array<i64: 1, 72>}, {transform_indices = @transform_7, window_bounds = array<i64: 16, 72>}]} {
    %c0 = arith.constant 0 : index
    %c0_0 = arith.constant 0 : index
    %0 = vector.load %arg1[%c0, %c0_0] : memref<16x32xf32, #tpu.memory_space<vmem>>, vector<16x32xf32>
    %1 = arith.truncf %0 : vector<16x32xf32> to vector<16x32xbf16>
    %c0_1 = arith.constant 0 : index
    %c0_2 = arith.constant 0 : index
    %2 = vector.load %arg2[%c0_1, %c0_2] : memref<32x128xbf16, #tpu.memory_space<vmem>>, vector<32x128xbf16>
    %cst = arith.constant dense<0.000000e+00> : vector<16x128xf32>
    %3 = tpu.matmul %1, %2, %cst {dimension_numbers = #tpu.dot_dimension_numbers<[1], [0], [0], [1], [0, 0, 1, 1], [], []>} : vector<16x32xbf16>, vector<32x128xbf16>, vector<16x128xf32> -> vector<16x128xf32>
    %c0_3 = arith.constant 0 : index
    %c0_4 = arith.constant 0 : index
    %4 = vector.load %arg3[%c0_3, %c0_4] : memref<1x128xf32, #tpu.memory_space<vmem>>, vector<1x128xf32>
    %5 = vector.broadcast %4 : vector<1x128xf32> to vector<16x128xf32>
    %6 = arith.addf %3, %5 : vector<16x128xf32>
    %cst_5 = arith.constant 0.000000e+00 : f32
    %7 = vector.broadcast %cst_5 : f32 to vector<16x128xf32>
    %8 = arith.maximumf %6, %7 : vector<16x128xf32>
    %9 = arith.truncf %8 : vector<16x128xf32> to vector<16x128xbf16>
    %c0_6 = arith.constant 0 : index
    %c0_7 = arith.constant 0 : index
    %10 = vector.load %arg4[%c0_6, %c0_7] : memref<128x128xbf16, #tpu.memory_space<vmem>>, vector<128x128xbf16>
    %cst_8 = arith.constant dense<0.000000e+00> : vector<16x128xf32>
    %11 = tpu.matmul %9, %10, %cst_8 {dimension_numbers = #tpu.dot_dimension_numbers<[1], [0], [0], [1], [0, 0, 1, 1], [], []>} : vector<16x128xbf16>, vector<128x128xbf16>, vector<16x128xf32> -> vector<16x128xf32>
    %c0_9 = arith.constant 0 : index
    %c0_10 = arith.constant 0 : index
    %12 = vector.load %arg5[%c0_9, %c0_10] : memref<1x128xf32, #tpu.memory_space<vmem>>, vector<1x128xf32>
    %13 = vector.broadcast %12 : vector<1x128xf32> to vector<16x128xf32>
    %14 = arith.addf %11, %13 : vector<16x128xf32>
    %cst_11 = arith.constant 0.000000e+00 : f32
    %15 = vector.broadcast %cst_11 : f32 to vector<16x128xf32>
    %16 = arith.maximumf %14, %15 : vector<16x128xf32>
    %17 = arith.truncf %16 : vector<16x128xf32> to vector<16x128xbf16>
    %c0_12 = arith.constant 0 : index
    %c0_13 = arith.constant 0 : index
    %18 = vector.load %arg6[%c0_12, %c0_13] : memref<128x72xbf16, #tpu.memory_space<vmem>>, vector<128x72xbf16>
    %cst_14 = arith.constant dense<0.000000e+00> : vector<16x72xf32>
    %19 = tpu.matmul %17, %18, %cst_14 {dimension_numbers = #tpu.dot_dimension_numbers<[1], [0], [0], [1], [0, 0, 1, 1], [], []>} : vector<16x128xbf16>, vector<128x72xbf16>, vector<16x72xf32> -> vector<16x72xf32>
    %c0_15 = arith.constant 0 : index
    %c0_16 = arith.constant 0 : index
    %20 = vector.load %arg7[%c0_15, %c0_16] : memref<1x72xf32, #tpu.memory_space<vmem>>, vector<1x72xf32>
    %21 = vector.broadcast %20 : vector<1x72xf32> to vector<16x72xf32>
    %22 = arith.addf %19, %21 : vector<16x72xf32>
    %c0_17 = arith.constant 0 : index
    %c0_18 = arith.constant 0 : index
    %23 = vector.load %arg8[%c0_17, %c0_18] : memref<16x72xf32, #tpu.memory_space<vmem>>, vector<16x72xf32>
    tpu.vector_store %arg8[%c0_17, %c0_18], %22 {strides = array<i32>} : memref<16x72xf32, #tpu.memory_space<vmem>>, vector<16x72xf32>,
    return
  }
  func.func @transform_0(%arg0: i32) -> (i32, i32) {
    %c0_i32 = arith.constant 0 : i32
    %c0_i32_0 = arith.constant 0 : i32
    return %arg0, %c0_i32 : i32, i32
  }
  func.func @transform_1(%arg0: i32) -> (i32, i32) {
    %c0_i32 = arith.constant 0 : i32
    %c0_i32_0 = arith.constant 0 : i32
    %c0_i32_1 = arith.constant 0 : i32
    return %c0_i32, %c0_i32_0 : i32, i32
  }
  func.func @transform_2(%arg0: i32) -> (i32, i32) {
    %c0_i32 = arith.constant 0 : i32
    %c0_i32_0 = arith.constant 0 : i32
    %c0_i32_1 = arith.constant 0 : i32
    return %c0_i32, %c0_i32_0 : i32, i32
  }
  func.func @transform_3(%arg0: i32) -> (i32, i32) {
    %c0_i32 = arith.constant 0 : i32
    %c0_i32_0 = arith.constant 0 : i32
    %c0_i32_1 = arith.constant 0 : i32
    return %c0_i32, %c0_i32_0 : i32, i32
  }
  func.func @transform_4(%arg0: i32) -> (i32, i32) {
    %c0_i32 = arith.constant 0 : i32
    %c0_i32_0 = arith.constant 0 : i32
    %c0_i32_1 = arith.constant 0 : i32
    return %c0_i32, %c0_i32_0 : i32, i32
  }
  func.func @transform_5(%arg0: i32) -> (i32, i32) {
    %c0_i32 = arith.constant 0 : i32
    %c0_i32_0 = arith.constant 0 : i32
    %c0_i32_1 = arith.constant 0 : i32
    return %c0_i32, %c0_i32_0 : i32, i32
  }
  func.func @transform_6(%arg0: i32) -> (i32, i32) {
    %c0_i32 = arith.constant 0 : i32
    %c0_i32_0 = arith.constant 0 : i32
    %c0_i32_1 = arith.constant 0 : i32
    return %c0_i32, %c0_i32_0 : i32, i32
  }
  func.func @transform_7(%arg0: i32) -> (i32, i32) {
    %c0_i32 = arith.constant 0 : i32
    %c0_i32_0 = arith.constant 0 : i32
    return %arg0, %c0_i32 : i32, i32
  }
}

</mosaic_0001>

<llo_original>
// kernel: _forward_impl.1
$region0: #{_forward_impl.1}
  #allocation0 [shape = 'u32[]', space=smem, size = 0x4, offset = 0x4, fixed_abs, tag = 'smem constant byte address 0x4 - core index']
  #allocation1 [shape = 'u32[144,128]{1,0:T(1,128)}', space=vmem, size = 0x12000, scoped, tag = 'internal scratch']
  %s0 = inlined_call_operand.vmem [shape: f32[16,32], index: 0, kind: input, shape index: {}]
  %s1 = inlined_call_operand.vmem [shape: bf16[32,128], index: 1, kind: input, shape index: {}]
  %s2 = inlined_call_operand.vmem [shape: f32[1,128], index: 2, kind: input, shape index: {}]
  %s3 = inlined_call_operand.vmem [shape: bf16[128,128], index: 3, kind: input, shape index: {}]
  %s4 = inlined_call_operand.vmem [shape: f32[1,128], index: 4, kind: input, shape index: {}]
  %s5 = inlined_call_operand.vmem [shape: bf16[128,72], index: 5, kind: input, shape index: {}]
  %s6 = inlined_call_operand.vmem [shape: f32[1,72], index: 6, kind: input, shape index: {}]
  %s7 = inlined_call_operand.vmem [shape: f32[16,72], index: 7, kind: output, shape index: {}]
  %s8 = sld [smem:[#allocation0]]
  $region38: #{_forward_impl.1} parent=0
    _
  %s10 = ssub.s32 1, %s8
  %s11 = scalar_select 0, %s10, %s8
  // Predicated region
  $region2: #{_forward_impl.1} parent=0 // pred_check
    _
  $region3: #{_forward_impl.1} parent=0 // pred_check_branch
    %13 = sbr.rel (0) target = $region5
  $region4: #{_forward_impl.1} parent=0 // pred_region
    _
  $region5: #{_forward_impl.1} parent=0 // pred_fallthru
    _
  // Predicated region
  $region6: #{_forward_impl.1} parent=0 // pred_check
    _
  $region7: #{_forward_impl.1} parent=0 // pred_check_branch
    %15 = sbr.rel (0) target = $region9
  $region8: #{_forward_impl.1} parent=0 // pred_region
    _
  $region9: #{_forward_impl.1} parent=0 // pred_fallthru
    _
  // Predicated region
  $region10: #{_forward_impl.1} parent=0 // pred_check
    _
  $region11: #{_forward_impl.1} parent=0 // pred_check_branch
    %17 = sbr.rel (0) target = $region13
  $region12: #{_forward_impl.1} parent=0 // pred_region
    _
  $region13: #{_forward_impl.1} parent=0 // pred_fallthru
    _
  // Predicated region
  $region14: #{_forward_impl.1} parent=0 // pred_check
    _
  $region15: #{_forward_impl.1} parent=0 // pred_check_branch
    %19 = sbr.rel (0) target = $region17
  $region16: #{_forward_impl.1} parent=0 // pred_region
    _
  $region17: #{_forward_impl.1} parent=0 // pred_fallthru
    _
  // Predicated region
  $region18: #{_forward_impl.1} parent=0 // pred_check
    _
  $region19: #{_forward_impl.1} parent=0 // pred_check_branch
    %21 = sbr.rel (0) target = $region21
  $region20: #{_forward_impl.1} parent=0 // pred_region
    _
  $region21: #{_forward_impl.1} parent=0 // pred_fallthru
    _
  // Predicated region
  $region22: #{_forward_impl.1} parent=0 // pred_check
    _
  $region23: #{_forward_impl.1} parent=0 // pred_check_branch
    %23 = sbr.rel (0) target = $region25
  $region24: #{_forward_impl.1} parent=0 // pred_region
    _
  $region25: #{_forward_impl.1} parent=0 // pred_fallthru
    _
  // Predicated region
  $region26: #{_forward_impl.1} parent=0 // pred_check
    _
  $region27: #{_forward_impl.1} parent=0 // pred_check_branch
    %25 = sbr.rel (0) target = $region29
  $region28: #{_forward_impl.1} parent=0 // pred_region
    _
  $region29: #{_forward_impl.1} parent=0 // pred_fallthru
    _
  %v27 = vld [vmem:[%s0] sm:$0xff]
  %v28 = vld [vmem:[%s0 + $0x8] sm:$0xff]
  %v29 = vpack.c.bf16 %v28, %v27
  %v30 = vld [vmem:[%s1] sm:$0xf]
  %v31 = vld [vmem:[%s1 + $0x4] sm:$0xf]
  %v32 = vld [vmem:[%s1 + $0x8] sm:$0xf]
  %v33 = vld [vmem:[%s1 + $0xc] sm:$0xf]
  %v34 = vld [vmem:[%s2] sm:$0x1]
  %v36 = vlaneseq
  %v37 = vshrl.u32 %v36, 7
  %v38 = vsub.s32 0, %v37
  %v39 = vrot.slane %v34, %v38
  %v45 = vunpack.c.l.b16 %v30
  %v46 = vunpack.c.l.b16 %v31
  %v47 = vunpack.c.l.b16 %v32
  %v48 = vunpack.c.l.b16 %v33
  %v49 = vpack.c.b16 %v46, %v45
  %v50 = vpack.c.b16 %v48, %v47
  %vm53 = vcmask 261120
  %v55 = vsel %vm53, %v29, 0
  %57 = vmatprep.subr.bf16.mxu0 0
  %58 = vmatpush1.bf16.msra.mxu0 %v49
  %59 = vmatprep.subr.bf16.mxu0 0
  %60 = vmatpush1.bf16.msra.mxu0 %v50
  %61 = vmatprep.subr.bf16.mxu0 0
  %62 = vmatpush1.bf16.msra.mxu0 0
  %63 = vmatprep.subr.bf16.mxu0 0
  %64 = vmatpush1.bf16.msra.mxu0 0
  %65 = vmatprep.subr.bf16.mxu0 0
  %66 = vmatpush1.bf16.msra.mxu0 0
  %67 = vmatprep.subr.bf16.mxu0 0
  %68 = vmatpush1.bf16.msra.mxu0 0
  %69 = vmatprep.subr.bf16.mxu0 0
  %70 = vmatpush1.bf16.msra.mxu0 0
  %71 = vmatprep.subr.bf16.mxu0 0
  %72 = vmatpush1.bf16.msra.mxu0 0
  %73 = vmatprep.subr.bf16.mxu0 0
  %74 = vmatpush1.bf16.msra.mxu0 0
  %75 = vmatprep.subr.bf16.mxu0 0
  %76 = vmatpush1.bf16.msra.mxu0 0
  %77 = vmatprep.subr.bf16.mxu0 0
  %78 = vmatpush1.bf16.msra.mxu0 0
  %79 = vmatprep.subr.bf16.mxu0 0
  %80 = vmatpush1.bf16.msra.mxu0 0
  %81 = vmatprep.subr.bf16.mxu0 0
  %82 = vmatpush1.bf16.msra.mxu0 0
  %83 = vmatprep.subr.bf16.mxu0 0
  %84 = vmatpush1.bf16.msra.mxu0 0
  %85 = vmatprep.subr.bf16.mxu0 0
  %86 = vmatpush1.bf16.msra.mxu0 0
  %87 = vmatprep.subr.bf16.mxu0 0
  %88 = vmatpush1.bf16.msra.mxu0 0
  %89 = vmatprep.mubr.bf16.mxu0 0
  %90 = vmatmul.mubr.bf16.gmra.mrb[0].mxu0 %v55
  %v91 = vpop.f32.mrb[0].mxu0
  %v92 = vadd.f32 %v39, %v91
  %v93 = vpop.f32.mrb[0].mxu0
  %v94 = vpop.f32.mrb[0].mxu0
  %v95 = vadd.f32 %v39, %v94
  %v96 = vpop.f32.mrb[0].mxu0
  %97 = vdwg.mxu0
  %v98 = vmax.f32 %v92, 0.0
  %v99 = vmax.f32 %v95, 0.0
  %v100 = vpack.c.bf16 %v99, %v98
  %v101 = vld [vmem:[%s3] sm:$0xf]
  %v102 = vld [vmem:[%s3 + $0x4] sm:$0xf]
  %v103 = vld [vmem:[%s3 + $0x8] sm:$0xf]
  %v104 = vld [vmem:[%s3 + $0xc] sm:$0xf]
  %v105 = vld [vmem:[%s3 + $0x10] sm:$0xf]
  %v106 = vld [vmem:[%s3 + $0x14] sm:$0xf]
  %v107 = vld [vmem:[%s3 + $0x18] sm:$0xf]
  %v108 = vld [vmem:[%s3 + $0x1c] sm:$0xf]
  %v109 = vld [vmem:[%s3 + $0x20] sm:$0xf]
  %v110 = vld [vmem:[%s3 + $0x24] sm:$0xf]
  %v111 = vld [vmem:[%s3 + $0x28] sm:$0xf]
  %v112 = vld [vmem:[%s3 + $0x2c] sm:$0xf]
  %v113 = vld [vmem:[%s3 + $0x30] sm:$0xf]
  %v114 = vld [vmem:[%s3 + $0x34] sm:$0xf]
  %v115 = vld [vmem:[%s3 + $0x38] sm:$0xf]
  %v116 = vld [vmem:[%s3 + $0x3c] sm:$0xf]
  %v117 = vld [vmem:[%s4] sm:$0x1]
  %v119 = vlaneseq
  %v120 = vshrl.u32 %v119, 7
  %v121 = vsub.s32 0, %v120
  %v122 = vrot.slane %v117, %v121
  %v140 = vunpack.c.l.b16 %v101
  %v141 = vunpack.c.l.b16 %v102
  %v142 = vunpack.c.l.b16 %v103
  %v143 = vunpack.c.l.b16 %v104
  %v144 = vunpack.c.l.b16 %v105
  %v145 = vunpack.c.l.b16 %v106
  %v146 = vunpack.c.l.b16 %v107
  %v147 = vunpack.c.l.b16 %v108
  %v148 = vunpack.c.l.b16 %v109
  %v149 = vunpack.c.l.b16 %v110
  %v150 = vunpack.c.l.b16 %v111
  %v151 = vunpack.c.l.b16 %v112
  %v152 = vunpack.c.l.b16 %v113
  %v153 = vunpack.c.l.b16 %v114
  %v154 = vunpack.c.l.b16 %v115
  %v155 = vunpack.c.l.b16 %v116
  %v156 = vpack.c.b16 %v141, %v140
  %v157 = vpack.c.b16 %v143, %v142
  %v158 = vpack.c.b16 %v145, %v144
  %v159 = vpack.c.b16 %v147, %v146
  %v160 = vpack.c.b16 %v149, %v148
  %v161 = vpack.c.b16 %v151, %v150
  %v162 = vpack.c.b16 %v153, %v152
  %v163 = vpack.c.b16 %v155, %v154
  %172 = vmatprep.subr.bf16.mxu0 0
  %173 = vmatpush1.bf16.msra.mxu0 %v156
  %174 = vmatprep.subr.bf16.mxu0 0
  %175 = vmatpush1.bf16.msra.mxu0 %v157
  %176 = vmatprep.subr.bf16.mxu0 0
  %177 = vmatpush1.bf16.msra.mxu0 %v158
  %178 = vmatprep.subr.bf16.mxu0 0
  %179 = vmatpush1.bf16.msra.mxu0 %v159
  %180 = vmatprep.subr.bf16.mxu0 0
  %181 = vmatpush1.bf16.msra.mxu0 %v160
  %182 = vmatprep.subr.bf16.mxu0 0
  %183 = vmatpush1.bf16.msra.mxu0 %v161
  %184 = vmatprep.subr.bf16.mxu0 0
  %185 = vmatpush1.bf16.msra.mxu0 %v162
  %186 = vmatprep.subr.bf16.mxu0 0
  %187 = vmatpush1.bf16.msra.mxu0 %v163
  %188 = vmatprep.subr.bf16.mxu0 0
  %189 = vmatpush1.bf16.msra.mxu0 0
  %190 = vmatprep.subr.bf16.mxu0 0
  %191 = vmatpush1.bf16.msra.mxu0 0
  %192 = vmatprep.subr.bf16.mxu0 0
  %193 = vmatpush1.bf16.msra.mxu0 0
  %194 = vmatprep.subr.bf16.mxu0 0
  %195 = vmatpush1.bf16.msra.mxu0 0
  %196 = vmatprep.subr.bf16.mxu0 0
  %197 = vmatpush1.bf16.msra.mxu0 0
  %198 = vmatprep.subr.bf16.mxu0 0
  %199 = vmatpush1.bf16.msra.mxu0 0
  %200 = vmatprep.subr.bf16.mxu0 0
  %201 = vmatpush1.bf16.msra.mxu0 0
  %202 = vmatprep.subr.bf16.mxu0 0
  %203 = vmatpush1.bf16.msra.mxu0 0
  %204 = vmatprep.mubr.bf16.mxu0 0
  %205 = vmatmul.mubr.bf16.gmra.mrb[0].mxu0 %v100
  %v206 = vpop.f32.mrb[0].mxu0
  %v207 = vadd.f32 %v122, %v206
  %v208 = vpop.f32.mrb[0].mxu0
  %v209 = vpop.f32.mrb[0].mxu0
  %v210 = vadd.f32 %v122, %v209
  %v211 = vpop.f32.mrb[0].mxu0
  %212 = vdwg.mxu0
  %v213 = vmax.f32 %v207, 0.0
  %v214 = vmax.f32 %v210, 0.0
  %v215 = vpack.c.bf16 %v214, %v213
  %v216 = vld [vmem:[%s5] sm:$0xf]
  %v217 = vld [vmem:[%s5 + $0x4] sm:$0xf]
  %v218 = vld [vmem:[%s5 + $0x8] sm:$0xf]
  %v219 = vld [vmem:[%s5 + $0xc] sm:$0xf]
  %v220 = vld [vmem:[%s5 + $0x10] sm:$0xf]
  %v221 = vld [vmem:[%s5 + $0x14] sm:$0xf]
  %v222 = vld [vmem:[%s5 + $0x18] sm:$0xf]
  %v223 = vld [vmem:[%s5 + $0x1c] sm:$0xf]
  %v224 = vld [vmem:[%s5 + $0x20] sm:$0xf]
  %v225 = vld [vmem:[%s5 + $0x24] sm:$0xf]
  %v226 = vld [vmem:[%s5 + $0x28] sm:$0xf]
  %v227 = vld [vmem:[%s5 + $0x2c] sm:$0xf]
  %v228 = vld [vmem:[%s5 + $0x30] sm:$0xf]
  %v229 = vld [vmem:[%s5 + $0x34] sm:$0xf]
  %v230 = vld [vmem:[%s5 + $0x38] sm:$0xf]
  %v231 = vld [vmem:[%s5 + $0x3c] sm:$0xf]
  %v232 = vld [vmem:[%s6] sm:$0x1]
  %v234 = vlaneseq
  %v235 = vshrl.u32 %v234, 7
  %v236 = vsub.s32 0, %v235
  %v237 = vrot.slane %v232, %v236
  %v255 = vunpack.c.l.b16 %v216
  %v256 = vunpack.c.l.b16 %v217
  %v257 = vunpack.c.l.b16 %v218
  %v258 = vunpack.c.l.b16 %v219
  %v259 = vunpack.c.l.b16 %v220
  %v260 = vunpack.c.l.b16 %v221
  %v261 = vunpack.c.l.b16 %v222
  %v262 = vunpack.c.l.b16 %v223
  %v263 = vunpack.c.l.b16 %v224
  %v264 = vunpack.c.l.b16 %v225
  %v265 = vunpack.c.l.b16 %v226
  %v266 = vunpack.c.l.b16 %v227
  %v267 = vunpack.c.l.b16 %v228
  %v268 = vunpack.c.l.b16 %v229
  %v269 = vunpack.c.l.b16 %v230
  %v270 = vunpack.c.l.b16 %v231
  %v271 = vpack.c.b16 %v256, %v255
  %v272 = vpack.c.b16 %v258, %v257
  %v273 = vpack.c.b16 %v260, %v259
  %v274 = vpack.c.b16 %v262, %v261
  %v275 = vpack.c.b16 %v264, %v263
  %v276 = vpack.c.b16 %v266, %v265
  %v277 = vpack.c.b16 %v268, %v267
  %v278 = vpack.c.b16 %v270, %v269
  %287 = vmatprep.subr.bf16.mxu0 0
  %288 = vmatpush1.bf16.msra.mxu0 %v271
  %289 = vmatprep.subr.bf16.mxu0 0
  %290 = vmatpush1.bf16.msra.mxu0 %v272
  %291 = vmatprep.subr.bf16.mxu0 0
  %292 = vmatpush1.bf16.msra.mxu0 %v273
  %293 = vmatprep.subr.bf16.mxu0 0
  %294 = vmatpush1.bf16.msra.mxu0 %v274
  %295 = vmatprep.subr.bf16.mxu0 0
  %296 = vmatpush1.bf16.msra.mxu0 %v275
  %297 = vmatprep.subr.bf16.mxu0 0
  %298 = vmatpush1.bf16.msra.mxu0 %v276
  %299 = vmatprep.subr.bf16.mxu0 0
  %300 = vmatpush1.bf16.msra.mxu0 %v277
  %301 = vmatprep.subr.bf16.mxu0 0
  %302 = vmatpush1.bf16.msra.mxu0 %v278
  %303 = vmatprep.subr.bf16.mxu0 0
  %304 = vmatpush1.bf16.msra.mxu0 0
  %305 = vmatprep.subr.bf16.mxu0 0
  %306 = vmatpush1.bf16.msra.mxu0 0
  %307 = vmatprep.subr.bf16.mxu0 0
  %308 = vmatpush1.bf16.msra.mxu0 0
  %309 = vmatprep.subr.bf16.mxu0 0
  %310 = vmatpush1.bf16.msra.mxu0 0
  %311 = vmatprep.subr.bf16.mxu0 0
  %312 = vmatpush1.bf16.msra.mxu0 0
  %313 = vmatprep.subr.bf16.mxu0 0
  %314 = vmatpush1.bf16.msra.mxu0 0
  %315 = vmatprep.subr.bf16.mxu0 0
  %316 = vmatpush1.bf16.msra.mxu0 0
  %317 = vmatprep.subr.bf16.mxu0 0
  %318 = vmatpush1.bf16.msra.mxu0 0
  %319 = vmatprep.mubr.bf16.mxu0 0
  %320 = vmatmul.mubr.bf16.gmra.mrb[0].mxu0 %v215
  %v321 = vpop.f32.mrb[0].mxu0
  %v322 = vadd.f32 %v237, %v321
  %v323 = vpop.f32.mrb[0].mxu0
  %v324 = vpop.f32.mrb[0].mxu0
  %v325 = vadd.f32 %v237, %v324
  %v326 = vpop.f32.mrb[0].mxu0
  %327 = vdwg.mxu0
  %vm328 = vcmask 588800
  %329 = vst.msk [vmem:[%s7] sm:$0xff] %vm328, %v322
  %330 = vst.msk [vmem:[%s7 + $0x8] sm:$0xff] %vm328, %v325
  // Predicated region
  $region30: #{_forward_impl.1} parent=0 // pred_check
    _
  $region31: #{_forward_impl.1} parent=0 // pred_check_branch
    %332 = sbr.rel (0) target = $region33
  $region32: #{_forward_impl.1} parent=0 // pred_region
    _
  $region33: #{_forward_impl.1} parent=0 // pred_fallthru
    _
  // Predicated region
  $region34: #{_forward_impl.1} parent=0 // pred_check
    _
  $region35: #{_forward_impl.1} parent=0 // pred_check_branch
    %334 = sbr.rel (0) target = $region37
  $region36: #{_forward_impl.1} parent=0 // pred_region
    _
  $region37: #{_forward_impl.1} parent=0 // pred_fallthru
    _

// kernel: _forward_impl.1
$region0: #{_forward_impl.1}
  #allocation0 [shape = 'u32[]', space=smem, size = 0x4, offset = 0x4, fixed_abs, tag = 'smem constant byte address 0x4 - core index']
  #allocation1 [shape = 'u32[144,128]{1,0:T(1,128)}', space=vmem, size = 0x12000, scoped, tag = 'internal scratch']
  %s0 = inlined_call_operand.vmem [shape: f32[16,32], index: 0, kind: input, shape index: {}]
  %s1 = inlined_call_operand.vmem [shape: bf16[32,128], index: 1, kind: input, shape index: {}]
  %s2 = inlined_call_operand.vmem [shape: f32[1,128], index: 2, kind: input, shape index: {}]
  %s3 = inlined_call_operand.vmem [shape: bf16[128,128], index: 3, kind: input, shape index: {}]
  %s4 = inlined_call_operand.vmem [shape: f32[1,128], index: 4, kind: input, shape index: {}]
  %s5 = inlined_call_operand.vmem [shape: bf16[128,72], index: 5, kind: input, shape index: {}]
  %s6 = inlined_call_operand.vmem [shape: f32[1,72], index: 6, kind: input, shape index: {}]
  %s7 = inlined_call_operand.vmem [shape: f32[16,72], index: 7, kind: output, shape index: {}]
  %s8 = sld [smem:[#allocation0]]
  $region38: #{_forward_impl.1} parent=0
    _
  %s10 = ssub.s32 1, %s8
  %s11 = scalar_select 0, %s10, %s8
  // Predicated region
  $region2: #{_forward_impl.1} parent=0 // pred_check
    _
  $region3: #{_forward_impl.1} parent=0 // pred_check_branch
    %13 = sbr.rel (0) target = $region5
  $region4: #{_forward_impl.1} parent=0 // pred_region
    _
  $region5: #{_forward_impl.1} parent=0 // pred_fallthru
    _
  // Predicated region
  $region6: #{_forward_impl.1} parent=0 // pred_check
    _
  $region7: #{_forward_impl.1} parent=0 // pred_check_branch
    %15 = sbr.rel (0) target = $region9
  $region8: #{_forward_impl.1} parent=0 // pred_region
    _
  $region9: #{_forward_impl.1} parent=0 // pred_fallthru
    _
  // Predicated region
  $region10: #{_forward_impl.1} parent=0 // pred_check
    _
  $region11: #{_forward_impl.1} parent=0 // pred_check_branch
    %17 = sbr.rel (0) target = $region13
  $region12: #{_forward_impl.1} parent=0 // pred_region
    _
  $region13: #{_forward_impl.1} parent=0 // pred_fallthru
    _
  // Predicated region
  $region14: #{_forward_impl.1} parent=0 // pred_check
    _
  $region15: #{_forward_impl.1} parent=0 // pred_check_branch
    %19 = sbr.rel (0) target = $region17
  $region16: #{_forward_impl.1} parent=0 // pred_region
    _
  $region17: #{_forward_impl.1} parent=0 // pred_fallthru
    _
  // Predicated region
  $region18: #{_forward_impl.1} parent=0 // pred_check
    _
  $region19: #{_forward_impl.1} parent=0 // pred_check_branch
    %21 = sbr.rel (0) target = $region21
  $region20: #{_forward_impl.1} parent=0 // pred_region
    _
  $region21: #{_forward_impl.1} parent=0 // pred_fallthru
    _
  // Predicated region
  $region22: #{_forward_impl.1} parent=0 // pred_check
    _
  $region23: #{_forward_impl.1} parent=0 // pred_check_branch
    %23 = sbr.rel (0) target = $region25
  $region24: #{_forward_impl.1} parent=0 // pred_region
    _
  $region25: #{_forward_impl.1} parent=0 // pred_fallthru
    _
  // Predicated region
  $region26: #{_forward_impl.1} parent=0 // pred_check
    _
  $region27: #{_forward_impl.1} parent=0 // pred_check_branch
    %25 = sbr.rel (0) target = $region29
  $region28: #{_forward_impl.1} parent=0 // pred_region
    _
  $region29: #{_forward_impl.1} parent=0 // pred_fallthru
    _
  %v27 = vld [vmem:[%s0] sm:$0xff]
  %v28 = vld [vmem:[%s0 + $0x8] sm:$0xff]
  %v29 = vpack.c.bf16 %v28, %v27
  %v30 = vld [vmem:[%s1] sm:$0xf]
  %v31 = vld [vmem:[%s1 + $0x4] sm:$0xf]
  %v32 = vld [vmem:[%s1 + $0x8] sm:$0xf]
  %v33 = vld [vmem:[%s1 + $0xc] sm:$0xf]
  %v34 = vld [vmem:[%s2] sm:$0x1]
  %v36 = vlaneseq
  %v37 = vshrl.u32 %v36, 7
  %v38 = vsub.s32 0, %v37
  %v39 = vrot.slane %v34, %v38
  %v45 = vunpack.c.l.b16 %v30
  %v46 = vunpack.c.l.b16 %v31
  %v47 = vunpack.c.l.b16 %v32
  %v48 = vunpack.c.l.b16 %v33
  %v49 = vpack.c.b16 %v46, %v45
  %v50 = vpack.c.b16 %v48, %v47
  %vm53 = vcmask 261120
  %v55 = vsel %vm53, %v29, 0
  %57 = vmatprep.subr.bf16.mxu0 0
  %58 = vmatpush1.bf16.msra.mxu0 %v49
  %59 = vmatprep.subr.bf16.mxu0 0
  %60 = vmatpush1.bf16.msra.mxu0 %v50
  %61 = vmatprep.subr.bf16.mxu0 0
  %62 = vmatpush1.bf16.msra.mxu0 0
  %63 = vmatprep.subr.bf16.mxu0 0
  %64 = vmatpush1.bf16.msra.mxu0 0
  %65 = vmatprep.subr.bf16.mxu0 0
  %66 = vmatpush1.bf16.msra.mxu0 0
  %67 = vmatprep.subr.bf16.mxu0 0
  %68 = vmatpush1.bf16.msra.mxu0 0
  %69 = vmatprep.subr.bf16.mxu0 0
  %70 = vmatpush1.bf16.msra.mxu0 0
  %71 = vmatprep.subr.bf16.mxu0 0
  %72 = vmatpush1.bf16.msra.mxu0 0
  %73 = vmatprep.subr.bf16.mxu0 0
  %74 = vmatpush1.bf16.msra.mxu0 0
  %75 = vmatprep.subr.bf16.mxu0 0
  %76 = vmatpush1.bf16.msra.mxu0 0
  %77 = vmatprep.subr.bf16.mxu0 0
  %78 = vmatpush1.bf16.msra.mxu0 0
  %79 = vmatprep.subr.bf16.mxu0 0
  %80 = vmatpush1.bf16.msra.mxu0 0
  %81 = vmatprep.subr.bf16.mxu0 0
  %82 = vmatpush1.bf16.msra.mxu0 0
  %83 = vmatprep.subr.bf16.mxu0 0
  %84 = vmatpush1.bf16.msra.mxu0 0
  %85 = vmatprep.subr.bf16.mxu0 0
  %86 = vmatpush1.bf16.msra.mxu0 0
  %87 = vmatprep.subr.bf16.mxu0 0
  %88 = vmatpush1.bf16.msra.mxu0 0
  %89 = vmatprep.mubr.bf16.mxu0 0
  %90 = vmatmul.mubr.bf16.gmra.mrb[0].mxu0 %v55
  %v91 = vpop.f32.mrb[0].mxu0
  %v92 = vadd.f32 %v39, %v91
  %v93 = vpop.f32.mrb[0].mxu0
  %v94 = vpop.f32.mrb[0].mxu0
  %v95 = vadd.f32 %v39, %v94
  %v96 = vpop.f32.mrb[0].mxu0
  %97 = vdwg.mxu0
  %v98 = vmax.f32 %v92, 0.0
  %v99 = vmax.f32 %v95, 0.0
  %v100 = vpack.c.bf16 %v99, %v98
  %v101 = vld [vmem:[%s3] sm:$0xf]
  %v102 = vld [vmem:[%s3 + $0x4] sm:$0xf]
  %v103 = vld [vmem:[%s3 + $0x8] sm:$0xf]
  %v104 = vld [vmem:[%s3 + $0xc] sm:$0xf]
  %v105 = vld [vmem:[%s3 + $0x10] sm:$0xf]
  %v106 = vld [vmem:[%s3 + $0x14] sm:$0xf]
  %v107 = vld [vmem:[%s3 + $0x18] sm:$0xf]
  %v108 = vld [vmem:[%s3 + $0x1c] sm:$0xf]
  %v109 = vld [vmem:[%s3 + $0x20] sm:$0xf]
  %v110 = vld [vmem:[%s3 + $0x24] sm:$0xf]
  %v111 = vld [vmem:[%s3 + $0x28] sm:$0xf]
  %v112 = vld [vmem:[%s3 + $0x2c] sm:$0xf]
  %v113 = vld [vmem:[%s3 + $0x30] sm:$0xf]
  %v114 = vld [vmem:[%s3 + $0x34] sm:$0xf]
  %v115 = vld [vmem:[%s3 + $0x38] sm:$0xf]
  %v116 = vld [vmem:[%s3 + $0x3c] sm:$0xf]
  %v117 = vld [vmem:[%s4] sm:$0x1]
  %v119 = vlaneseq
  %v120 = vshrl.u32 %v119, 7
  %v121 = vsub.s32 0, %v120
  %v122 = vrot.slane %v117, %v121
  %v140 = vunpack.c.l.b16 %v101
  %v141 = vunpack.c.l.b16 %v102
  %v142 = vunpack.c.l.b16 %v103
  %v143 = vunpack.c.l.b16 %v104
  %v144 = vunpack.c.l.b16 %v105
  %v145 = vunpack.c.l.b16 %v106
  %v146 = vunpack.c.l.b16 %v107
  %v147 = vunpack.c.l.b16 %v108
  %v148 = vunpack.c.l.b16 %v109
  %v149 = vunpack.c.l.b16 %v110
  %v150 = vunpack.c.l.b16 %v111
  %v151 = vunpack.c.l.b16 %v112
  %v152 = vunpack.c.l.b16 %v113
  %v153 = vunpack.c.l.b16 %v114
  %v154 = vunpack.c.l.b16 %v115
  %v155 = vunpack.c.l.b16 %v116
  %v156 = vpack.c.b16 %v141, %v140
  %v157 = vpack.c.b16 %v143, %v142
  %v158 = vpack.c.b16 %v145, %v144
  %v159 = vpack.c.b16 %v147, %v146
  %v160 = vpack.c.b16 %v149, %v148
  %v161 = vpack.c.b16 %v151, %v150
  %v162 = vpack.c.b16 %v153, %v152
  %v163 = vpack.c.b16 %v155, %v154
  %172 = vmatprep.subr.bf16.mxu0 0
  %173 = vmatpush1.bf16.msra.mxu0 %v156
  %174 = vmatprep.subr.bf16.mxu0 0
  %175 = vmatpush1.bf16.msra.mxu0 %v157
  %176 = vmatprep.subr.bf16.mxu0 0
  %177 = vmatpush1.bf16.msra.mxu0 %v158
  %178 = vmatprep.subr.bf16.mxu0 0
  %179 = vmatpush1.bf16.msra.mxu0 %v159
  %180 = vmatprep.subr.bf16.mxu0 0
  %181 = vmatpush1.bf16.msra.mxu0 %v160
  %182 = vmatprep.subr.bf16.mxu0 0
  %183 = vmatpush1.bf16.msra.mxu0 %v161
  %184 = vmatprep.subr.bf16.mxu0 0
  %185 = vmatpush1.bf16.msra.mxu0 %v162
  %186 = vmatprep.subr.bf16.mxu0 0
  %187 = vmatpush1.bf16.msra.mxu0 %v163
  %188 = vmatprep.subr.bf16.mxu0 0
  %189 = vmatpush1.bf16.msra.mxu0 0
  %190 = vmatprep.subr.bf16.mxu0 0
  %191 = vmatpush1.bf16.msra.mxu0 0
  %192 = vmatprep.subr.bf16.mxu0 0
  %193 = vmatpush1.bf16.msra.mxu0 0
  %194 = vmatprep.subr.bf16.mxu0 0
  %195 = vmatpush1.bf16.msra.mxu0 0
  %196 = vmatprep.subr.bf16.mxu0 0
  %197 = vmatpush1.bf16.msra.mxu0 0
  %198 = vmatprep.subr.bf16.mxu0 0
  %199 = vmatpush1.bf16.msra.mxu0 0
  %200 = vmatprep.subr.bf16.mxu0 0
  %201 = vmatpush1.bf16.msra.mxu0 0
  %202 = vmatprep.subr.bf16.mxu0 0
  %203 = vmatpush1.bf16.msra.mxu0 0
  %204 = vmatprep.mubr.bf16.mxu0 0
  %205 = vmatmul.mubr.bf16.gmra.mrb[0].mxu0 %v100
  %v206 = vpop.f32.mrb[0].mxu0
  %v207 = vadd.f32 %v122, %v206
  %v208 = vpop.f32.mrb[0].mxu0
  %v209 = vpop.f32.mrb[0].mxu0
  %v210 = vadd.f32 %v122, %v209
  %v211 = vpop.f32.mrb[0].mxu0
  %212 = vdwg.mxu0
  %v213 = vmax.f32 %v207, 0.0
  %v214 = vmax.f32 %v210, 0.0
  %v215 = vpack.c.bf16 %v214, %v213
  %v216 = vld [vmem:[%s5] sm:$0xf]
  %v217 = vld [vmem:[%s5 + $0x4] sm:$0xf]
  %v218 = vld [vmem:[%s5 + $0x8] sm:$0xf]
  %v219 = vld [vmem:[%s5 + $0xc] sm:$0xf]
  %v220 = vld [vmem:[%s5 + $0x10] sm:$0xf]
  %v221 = vld [vmem:[%s5 + $0x14] sm:$0xf]
  %v222 = vld [vmem:[%s5 + $0x18] sm:$0xf]
  %v223 = vld [vmem:[%s5 + $0x1c] sm:$0xf]
  %v224 = vld [vmem:[%s5 + $0x20] sm:$0xf]
  %v225 = vld [vmem:[%s5 + $0x24] sm:$0xf]
  %v226 = vld [vmem:[%s5 + $0x28] sm:$0xf]
  %v227 = vld [vmem:[%s5 + $0x2c] sm:$0xf]
  %v228 = vld [vmem:[%s5 + $0x30] sm:$0xf]
  %v229 = vld [vmem:[%s5 + $0x34] sm:$0xf]
  %v230 = vld [vmem:[%s5 + $0x38] sm:$0xf]
  %v231 = vld [vmem:[%s5 + $0x3c] sm:$0xf]
  %v232 = vld [vmem:[%s6] sm:$0x1]
  %v234 = vlaneseq
  %v235 = vshrl.u32 %v234, 7
  %v236 = vsub.s32 0, %v235
  %v237 = vrot.slane %v232, %v236
  %v255 = vunpack.c.l.b16 %v216
  %v256 = vunpack.c.l.b16 %v217
  %v257 = vunpack.c.l.b16 %v218
  %v258 = vunpack.c.l.b16 %v219
  %v259 = vunpack.c.l.b16 %v220
  %v260 = vunpack.c.l.b16 %v221
  %v261 = vunpack.c.l.b16 %v222
  %v262 = vunpack.c.l.b16 %v223
  %v263 = vunpack.c.l.b16 %v224
  %v264 = vunpack.c.l.b16 %v225
  %v265 = vunpack.c.l.b16 %v226
  %v266 = vunpack.c.l.b16 %v227
  %v267 = vunpack.c.l.b16 %v228
  %v268 = vunpack.c.l.b16 %v229
  %v269 = vunpack.c.l.b16 %v230
  %v270 = vunpack.c.l.b16 %v231
  %v271 = vpack.c.b16 %v256, %v255
  %v272 = vpack.c.b16 %v258, %v257
  %v273 = vpack.c.b16 %v260, %v259
  %v274 = vpack.c.b16 %v262, %v261
  %v275 = vpack.c.b16 %v264, %v263
  %v276 = vpack.c.b16 %v266, %v265
  %v277 = vpack.c.b16 %v268, %v267
  %v278 = vpack.c.b16 %v270, %v269
  %287 = vmatprep.subr.bf16.mxu0 0
  %288 = vmatpush1.bf16.msra.mxu0 %v271
  %289 = vmatprep.subr.bf16.mxu0 0
  %290 = vmatpush1.bf16.msra.mxu0 %v272
  %291 = vmatprep.subr.bf16.mxu0 0
  %292 = vmatpush1.bf16.msra.mxu0 %v273
  %293 = vmatprep.subr.bf16.mxu0 0
  %294 = vmatpush1.bf16.msra.mxu0 %v274
  %295 = vmatprep.subr.bf16.mxu0 0
  %296 = vmatpush1.bf16.msra.mxu0 %v275
  %297 = vmatprep.subr.bf16.mxu0 0
  %298 = vmatpush1.bf16.msra.mxu0 %v276
  %299 = vmatprep.subr.bf16.mxu0 0
  %300 = vmatpush1.bf16.msra.mxu0 %v277
  %301 = vmatprep.subr.bf16.mxu0 0
  %302 = vmatpush1.bf16.msra.mxu0 %v278
  %303 = vmatprep.subr.bf16.mxu0 0
  %304 = vmatpush1.bf16.msra.mxu0 0
  %305 = vmatprep.subr.bf16.mxu0 0
  %306 = vmatpush1.bf16.msra.mxu0 0
  %307 = vmatprep.subr.bf16.mxu0 0
  %308 = vmatpush1.bf16.msra.mxu0 0
  %309 = vmatprep.subr.bf16.mxu0 0
  %310 = vmatpush1.bf16.msra.mxu0 0
  %311 = vmatprep.subr.bf16.mxu0 0
  %312 = vmatpush1.bf16.msra.mxu0 0
  %313 = vmatprep.subr.bf16.mxu0 0
  %314 = vmatpush1.bf16.msra.mxu0 0
  %315 = vmatprep.subr.bf16.mxu0 0
  %316 = vmatpush1.bf16.msra.mxu0 0
  %317 = vmatprep.subr.bf16.mxu0 0
  %318 = vmatpush1.bf16.msra.mxu0 0
  %319 = vmatprep.mubr.bf16.mxu0 0
  %320 = vmatmul.mubr.bf16.gmra.mrb[0].mxu0 %v215
  %v321 = vpop.f32.mrb[0].mxu0
  %v322 = vadd.f32 %v237, %v321
  %v323 = vpop.f32.mrb[0].mxu0
  %v324 = vpop.f32.mrb[0].mxu0
  %v325 = vadd.f32 %v237, %v324
  %v326 = vpop.f32.mrb[0].mxu0
  %327 = vdwg.mxu0
  %vm328 = vcmask 588800
  %329 = vst.msk [vmem:[%s7] sm:$0xff] %vm328, %v322
  %330 = vst.msk [vmem:[%s7 + $0x8] sm:$0xff] %vm328, %v325
  // Predicated region
  $region30: #{_forward_impl.1} parent=0 // pred_check
    _
  $region31: #{_forward_impl.1} parent=0 // pred_check_branch
    %332 = sbr.rel (0) target = $region33
  $region32: #{_forward_impl.1} parent=0 // pred_region
    _
  $region33: #{_forward_impl.1} parent=0 // pred_fallthru
    _
  // Predicated region
  $region34: #{_forward_impl.1} parent=0 // pred_check
    _
  $region35: #{_forward_impl.1} parent=0 // pred_check_branch
    %334 = sbr.rel (0) target = $region37
  $region36: #{_forward_impl.1} parent=0 // pred_region
    _
  $region37: #{_forward_impl.1} parent=0 // pred_fallthru
    _

</llo_original>
